<compile_context>
chip_gen: v7x
topology: tpu7x:2x2x1
jax: 0.10.0
libtpu: 0.0.40
codegen_flags: <defaults>
</compile_context>

<pallas_src>
import jax
import jax.numpy as jnp
import numpy as np
from jax.experimental import pallas as pl
from jax.experimental.pallas import tpu as pltpu

LN_EPS = 1e-5


def _round_up(v, m):
    return (v + m - 1) // m * m


def _mln_kernel(x_ref, c_ref, wr_ref, br_ref, wgb_ref, bgb_ref, o_ref):
    f_dim = x_ref.shape[-1]

    # ---- LayerNorm(x) over last dim, no affine (f32 elementwise math) ----
    x = x_ref[...].astype(jnp.float32)
    mean = jnp.mean(x, axis=-1, keepdims=True)
    centered = x - mean
    var = jnp.mean(centered * centered, axis=-1, keepdims=True)
    x_ln = centered * jax.lax.rsqrt(var + LN_EPS)

    # ---- h = ReLU(c @ Wr + br): operands in native dtype, f32 accumulation ----
    h = jnp.dot(c_ref[...], wr_ref[...], preferred_element_type=jnp.float32)
    h = jnp.maximum(h + br_ref[...].astype(jnp.float32), 0.0)

    # ---- fused gamma|beta projection: single (f_dim, 2*f_dim) matmul ----
    # NOTE: slice boundary is at f_dim; keep f_dim a multiple of 128 in
    # production for a perfectly lane-aligned split (it is for f_dim=256).
    gb = jnp.dot(h.astype(wgb_ref.dtype), wgb_ref[...],
                 preferred_element_type=jnp.float32)
    gb = gb + bgb_ref[...].astype(jnp.float32)
    gamma = gb[:, :f_dim]
    beta = gb[:, f_dim:]

    # ---- modulate ----
    o_ref[...] = (gamma * x_ln + beta).astype(o_ref.dtype)


def mln_forward(x, c, params, *, tile_m=256, vmem_limit_bytes=48 * 1024 * 1024):
    """x: (..., f_dim), c: (..., c_dim) with matching leading dims."""
    f_dim = x.shape[-1]
    c_dim = c.shape[-1]
    lead = x.shape[:-1]
    assert c.shape[:-1] == lead

    wr, br, wgb, bgb = params["wr"], params["br"], params["wgb"], params["bgb"]
    assert wr.shape == (c_dim, f_dim) and wgb.shape == (f_dim, 2 * f_dim)

    x2 = x.reshape(-1, f_dim)
    c2 = c.reshape(-1, c_dim)
    m = x2.shape[0]

    # Large row tiles keep the MXU fed and amortize the ~0.35us per-grid-step
    # overhead; clamp down for small inputs, keep a multiple of 8 sublanes,
    # and zero-pad rows so the grid divides evenly (pad rows are discarded).
    tile_m = _round_up(max(8, min(tile_m, _round_up(m, 8))), 8)
    pad = (-m) % tile_m
    if pad:
        x2 = jnp.pad(x2, ((0, pad), (0, 0)))
        c2 = jnp.pad(c2, ((0, pad), (0, 0)))
    mp = m + pad
    grid = (mp // tile_m,)

    isz = lambda a: jnp.dtype(a.dtype).itemsize
    cost = pl.CostEstimate(
        flops=int(2 * mp * c_dim * f_dim            # reduce linear
                  + 2 * mp * f_dim * (2 * f_dim)    # fused gamma|beta linear
                  + 8 * mp * f_dim),                # LN + modulate elementwise
        transcendentals=int(mp),                    # one rsqrt per row
        bytes_accessed=int(x2.size * isz(x2) + c2.size * isz(c2)
                           + mp * f_dim * isz(x2)
                           + wr.size * isz(wr) + br.size * isz(br)
                           + wgb.size * isz(wgb) + bgb.size * isz(bgb)),
    )

    # Weight/bias blocks have a constant index_map -> single-buffer them.
    const_buf = pl.Buffered(1)

    out = pl.pallas_call(
        _mln_kernel,
        out_shape=jax.ShapeDtypeStruct((mp, f_dim), x.dtype),
        grid_spec=pltpu.PrefetchScalarGridSpec(
            num_scalar_prefetch=0,
            grid=grid,
            in_specs=[
                pl.BlockSpec((tile_m, f_dim), lambda i: (i, 0)),   # x rows
                pl.BlockSpec((tile_m, c_dim), lambda i: (i, 0)),   # c rows
                pl.BlockSpec((c_dim, f_dim), lambda i: (0, 0),
                             pipeline_mode=const_buf),             # Wr
                pl.BlockSpec((1, f_dim), lambda i: (0, 0),
                             pipeline_mode=const_buf),             # br
                pl.BlockSpec((f_dim, 2 * f_dim), lambda i: (0, 0),
                             pipeline_mode=const_buf),             # [Wg | Wb]
                pl.BlockSpec((1, 2 * f_dim), lambda i: (0, 0),
                             pipeline_mode=const_buf),             # [bg | bb]
            ],
            out_specs=pl.BlockSpec((tile_m, f_dim), lambda i: (i, 0)),
        ),
        compiler_params=pltpu.CompilerParams(
            dimension_semantics=("parallel",),
            vmem_limit_bytes=vmem_limit_bytes),
        cost_estimate=cost,
    )(x2, c2, wr, br, wgb, bgb)

    if pad:
        out = out[:m]
    return out.reshape(*lead, f_dim)


def init_mln_params(key, c_dim, f_dim, dtype=jnp.float32):
    """Parameter init mirroring MLN.__init__/reset_parameters.

    reduce Linear: default (uniform) init.
    gamma Linear : weight = 0, bias = 1.
    beta Linear  : weight = 0, bias = 0.
    gamma/beta are stored FUSED: wgb = [Wg | Wb] (f_dim, 2*f_dim),
    bgb = [bg | bb] (1, 2*f_dim). Weights stored as (in, out).
    """
    k_w, k_b = jax.random.split(key)
    bound = 1.0 / np.sqrt(c_dim)
    wr = jax.random.uniform(k_w, (c_dim, f_dim), dtype, -bound, bound)
    br = jax.random.uniform(k_b, (1, f_dim), dtype, -bound, bound)
    wgb = jnp.zeros((f_dim, 2 * f_dim), dtype)
    bgb = jnp.concatenate([jnp.ones((1, f_dim), dtype),
                           jnp.zeros((1, f_dim), dtype)], axis=-1)
    return dict(wr=wr, br=br, wgb=wgb, bgb=bgb)


def mln_reference(x, c, params):
    """Pure-JAX reference for correctness checking."""
    f_dim = x.shape[-1]
    x32 = x.astype(jnp.float32)
    mean = jnp.mean(x32, axis=-1, keepdims=True)
    var = jnp.mean((x32 - mean) ** 2, axis=-1, keepdims=True)
    x_ln = (x32 - mean) / jnp.sqrt(var + LN_EPS)
    h = jnp.maximum(
        c.astype(jnp.float32) @ params["wr"].astype(jnp.float32)
        + params["br"][0].astype(jnp.float32), 0.0)
    gb = h @ params["wgb"].astype(jnp.float32) + params["bgb"][0].astype(jnp.float32)
    gamma, beta = gb[..., :f_dim], gb[..., f_dim:]
    return (gamma * x_ln + beta).astype(x.dtype)


if __name__ == "__main__":
    key = jax.random.PRNGKey(0)
    k_x, k_c, k_p, k_wgb, k_bgb = jax.random.split(key, 5)

    batch, seq = 2, 8
    c_dim, f_dim = 16, 32

    x = jax.random.normal(k_x, (batch, seq, f_dim), jnp.float32)
    c = jax.random.normal(k_c, (batch, seq, c_dim), jnp.float32)

    # Check 1: module-faithful init (gamma W=0/b=1, beta W=0/b=0) -> out == LN(x).
    params = init_mln_params(k_p, c_dim, f_dim)
    out0 = jax.block_until_ready(mln_forward(x, c, params))
    ref0 = mln_reference(x, c, params)
    np.testing.assert_allclose(np.asarray(out0), np.asarray(ref0),
                               rtol=1e-5, atol=1e-5)

    # Check 2: perturb gamma/beta weights so the fused projection path is
    # exercised (looser tolerance: MXU f32 matmul precision may differ from
    # the XLA reference dot).
    params["wgb"] = 0.1 * jax.random.normal(k_wgb, params["wgb"].shape, jnp.float32)
    params["bgb"] = params["bgb"] + 0.1 * jax.random.normal(
        k_bgb, params["bgb"].shape, jnp.float32)
    out1 = jax.block_until_ready(mln_forward(x, c, params))
    ref1 = mln_reference(x, c, params)
    np.testing.assert_allclose(np.asarray(out1), np.asarray(ref1),
                               rtol=2e-2, atol=2e-2)

    print("KERNEL_OK")
</pallas_src>

<mosaic_0001>
module attributes {stable_mosaic.version = 11 : i64} {
  func.func @_mln_kernel(%arg0: i32, %arg1: memref<16x32xf32, #tpu.memory_space<vmem>>, %arg2: memref<16x16xf32, #tpu.memory_space<vmem>>, %arg3: memref<16x32xf32, #tpu.memory_space<vmem>>, %arg4: memref<1x32xf32, #tpu.memory_space<vmem>>, %arg5: memref<32x64xf32, #tpu.memory_space<vmem>>, %arg6: memref<1x64xf32, #tpu.memory_space<vmem>>, %arg7: memref<16x32xf32, #tpu.memory_space<vmem>>) attributes {dimension_semantics = [#tpu.dimension_semantics<parallel>], iteration_bounds = array<i64: 1>, scalar_prefetch = 0 : i64, scratch_operands = 0 : i64, tpu.core_type = #tpu.core_type<tc>, window_params = [{transform_indices = @transform_0, window_bounds = array<i64: 16, 32>}, {transform_indices = @transform_1, window_bounds = array<i64: 16, 16>}, {pipeline_mode = #tpu.pipeline_mode<synchronous>, transform_indices = @transform_2, window_bounds = array<i64: 16, 32>}, {pipeline_mode = #tpu.pipeline_mode<synchronous>, transform_indices = @transform_3, window_bounds = array<i64: 1, 32>}, {pipeline_mode = #tpu.pipeline_mode<synchronous>, transform_indices = @transform_4, window_bounds = array<i64: 32, 64>}, {pipeline_mode = #tpu.pipeline_mode<synchronous>, transform_indices = @transform_5, window_bounds = array<i64: 1, 64>}, {transform_indices = @transform_6, window_bounds = array<i64: 16, 32>}]} {
    %c0 = arith.constant 0 : index
    %c0_0 = arith.constant 0 : index
    %0 = vector.load %arg1[%c0, %c0_0] : memref<16x32xf32, #tpu.memory_space<vmem>>, vector<16x32xf32>
    %cst = arith.constant dense<0.000000e+00> : vector<16xf32>
    %1 = vector.multi_reduction <add>, %0, %cst [1] : vector<16x32xf32> to vector<16xf32>
    %2 = vector.shape_cast %1 : vector<16xf32> to vector<16x1xf32>
    %cst_1 = arith.constant 3.200000e+01 : f32
    %3 = vector.broadcast %cst_1 : f32 to vector<16x1xf32>
    %4 = arith.divf %2, %3 : vector<16x1xf32>
    %5 = vector.broadcast %4 : vector<16x1xf32> to vector<16x32xf32>
    %6 = arith.subf %0, %5 : vector<16x32xf32>
    %7 = arith.mulf %6, %6 : vector<16x32xf32>
    %cst_2 = arith.constant dense<0.000000e+00> : vector<16xf32>
    %8 = vector.multi_reduction <add>, %7, %cst_2 [1] : vector<16x32xf32> to vector<16xf32>
    %9 = vector.shape_cast %8 : vector<16xf32> to vector<16x1xf32>
    %cst_3 = arith.constant 3.200000e+01 : f32
    %10 = vector.broadcast %cst_3 : f32 to vector<16x1xf32>
    %11 = arith.divf %9, %10 : vector<16x1xf32>
    %cst_4 = arith.constant 9.99999974E-6 : f32
    %12 = vector.broadcast %cst_4 : f32 to vector<16x1xf32>
    %13 = arith.addf %11, %12 : vector<16x1xf32>
    %14 = math.rsqrt %13 : vector<16x1xf32>
    %15 = vector.broadcast %14 : vector<16x1xf32> to vector<16x32xf32>
    %16 = arith.mulf %6, %15 : vector<16x32xf32>
    %c0_5 = arith.constant 0 : index
    %c0_6 = arith.constant 0 : index
    %17 = vector.load %arg2[%c0_5, %c0_6] : memref<16x16xf32, #tpu.memory_space<vmem>>, vector<16x16xf32>
    %c0_7 = arith.constant 0 : index
    %c0_8 = arith.constant 0 : index
    %18 = vector.load %arg3[%c0_7, %c0_8] : memref<16x32xf32, #tpu.memory_space<vmem>>, vector<16x32xf32>
    %cst_9 = arith.constant dense<0.000000e+00> : vector<16x32xf32>
    %19 = tpu.matmul %17, %18, %cst_9 {dimension_numbers = #tpu.dot_dimension_numbers<[1], [0], [0], [1], [0, 0, 1, 1], [], []>} : vector<16x16xf32>, vector<16x32xf32>, vector<16x32xf32> -> vector<16x32xf32>
    %c0_10 = arith.constant 0 : index
    %c0_11 = arith.constant 0 : index
    %20 = vector.load %arg4[%c0_10, %c0_11] : memref<1x32xf32, #tpu.memory_space<vmem>>, vector<1x32xf32>
    %21 = vector.broadcast %20 : vector<1x32xf32> to vector<16x32xf32>
    %22 = arith.addf %19, %21 : vector<16x32xf32>
    %cst_12 = arith.constant 0.000000e+00 : f32
    %23 = vector.broadcast %cst_12 : f32 to vector<16x32xf32>
    %24 = arith.maximumf %22, %23 : vector<16x32xf32>
    %c0_13 = arith.constant 0 : index
    %c0_14 = arith.constant 0 : index
    %25 = vector.load %arg5[%c0_13, %c0_14] : memref<32x64xf32, #tpu.memory_space<vmem>>, vector<32x64xf32>
    %cst_15 = arith.constant dense<0.000000e+00> : vector<16x64xf32>
    %26 = tpu.matmul %24, %25, %cst_15 {dimension_numbers = #tpu.dot_dimension_numbers<[1], [0], [0], [1], [0, 0, 1, 1], [], []>} : vector<16x32xf32>, vector<32x64xf32>, vector<16x64xf32> -> vector<16x64xf32>
    %c0_16 = arith.constant 0 : index
    %c0_17 = arith.constant 0 : index
    %27 = vector.load %arg6[%c0_16, %c0_17] : memref<1x64xf32, #tpu.memory_space<vmem>>, vector<1x64xf32>
    %28 = vector.broadcast %27 : vector<1x64xf32> to vector<16x64xf32>
    %29 = arith.addf %26, %28 : vector<16x64xf32>
    %30 = vector.extract_strided_slice %29 {offsets = [0, 0], sizes = [16, 32], strides = [1, 1]} : vector<16x64xf32> to vector<16x32xf32>
    %31 = vector.extract_strided_slice %29 {offsets = [0, 32], sizes = [16, 32], strides = [1, 1]} : vector<16x64xf32> to vector<16x32xf32>
    %32 = arith.mulf %30, %16 : vector<16x32xf32>
    %33 = arith.addf %32, %31 : vector<16x32xf32>
    %c0_18 = arith.constant 0 : index
    %c0_19 = arith.constant 0 : index
    %34 = vector.load %arg7[%c0_18, %c0_19] : memref<16x32xf32, #tpu.memory_space<vmem>>, vector<16x32xf32>
    tpu.vector_store %arg7[%c0_18, %c0_19], %33 {strides = array<i32>} : memref<16x32xf32, #tpu.memory_space<vmem>>, vector<16x32xf32>,
    return
  }
  func.func @transform_0(%arg0: i32) -> (i32, i32) {
    %c0_i32 = arith.constant 0 : i32
    %c0_i32_0 = arith.constant 0 : i32
    return %arg0, %c0_i32 : i32, i32
  }
  func.func @transform_1(%arg0: i32) -> (i32, i32) {
    %c0_i32 = arith.constant 0 : i32
    %c0_i32_0 = arith.constant 0 : i32
    return %arg0, %c0_i32 : i32, i32
  }
  func.func @transform_2(%arg0: i32) -> (i32, i32) {
    %c0_i32 = arith.constant 0 : i32
    %c0_i32_0 = arith.constant 0 : i32
    %c0_i32_1 = arith.constant 0 : i32
    return %c0_i32, %c0_i32_0 : i32, i32
  }
  func.func @transform_3(%arg0: i32) -> (i32, i32) {
    %c0_i32 = arith.constant 0 : i32
    %c0_i32_0 = arith.constant 0 : i32
    %c0_i32_1 = arith.constant 0 : i32
    return %c0_i32, %c0_i32_0 : i32, i32
  }
  func.func @transform_4(%arg0: i32) -> (i32, i32) {
    %c0_i32 = arith.constant 0 : i32
    %c0_i32_0 = arith.constant 0 : i32
    %c0_i32_1 = arith.constant 0 : i32
    return %c0_i32, %c0_i32_0 : i32, i32
  }
  func.func @transform_5(%arg0: i32) -> (i32, i32) {
    %c0_i32 = arith.constant 0 : i32
    %c0_i32_0 = arith.constant 0 : i32
    %c0_i32_1 = arith.constant 0 : i32
    return %c0_i32, %c0_i32_0 : i32, i32
  }
  func.func @transform_6(%arg0: i32) -> (i32, i32) {
    %c0_i32 = arith.constant 0 : i32
    %c0_i32_0 = arith.constant 0 : i32
    return %arg0, %c0_i32 : i32, i32
  }
}

</mosaic_0001>

<llo_original>
// kernel: tpu_custom_call.1
$region0: #{tpu_custom_call.1}
  #allocation0 [shape = 'u32[]', space=smem, size = 0x4, offset = 0x4, fixed_abs, tag = 'smem constant byte address 0x4 - core index']
  #allocation1 [shape = 'u32[144,128]{1,0:T(1,128)}', space=vmem, size = 0x12000, scoped, tag = 'internal scratch']
  %s0 = inlined_call_operand.hbm [shape: f32[16,32], index: 0, kind: input, shape index: {}]
  %s1 = inlined_call_operand.hbm [shape: f32[16,16], index: 1, kind: input, shape index: {}]
  %s2 = inlined_call_operand.hbm [shape: f32[16,32], index: 2, kind: input, shape index: {}]
  %s3 = inlined_call_operand.vmem [shape: f32[1,32], index: 3, kind: input, shape index: {}]
  %s4 = inlined_call_operand.hbm [shape: f32[32,64], index: 4, kind: input, shape index: {}]
  %s5 = inlined_call_operand.vmem [shape: f32[1,64], index: 5, kind: input, shape index: {}]
  %s6 = inlined_call_operand.hbm [shape: f32[16,32], index: 6, kind: output, shape index: {}]
  %s7 = sld [smem:[#allocation0]]
  $region50: #{tpu_custom_call.1} parent=0
    _
  %s9 = ssub.s32 1, %s7
  %s10 = scalar_select 0, %s9, %s7
  $region1: #{tpu_custom_call.1} parent=0
    #allocation2 [shape = 'u8[8192]{0}', space=vmem, size = 0x2000, scoped, tag = 'input window, operand 0, single buffered']
    #allocation3 [shape = 's32[1]{0}', space=sflag, size = 0x4, scoped, tag = 'scoped memory for tpu_custom_call.1']
    #allocation4 [shape = 's32[1]{0}', space=sflag, size = 0x4, scoped, tag = 'scoped memory for tpu_custom_call.1']
    #allocation5 [shape = 'u8[8192]{0}', space=vmem, size = 0x2000, scoped, tag = 'input window, operand 1, single buffered']
    #allocation6 [shape = 's32[1]{0}', space=sflag, size = 0x4, scoped, tag = 'scoped memory for tpu_custom_call.1']
    #allocation7 [shape = 'u8[8192]{0}', space=vmem, size = 0x2000, scoped, tag = 'input window, operand 2, single buffered']
    #allocation8 [shape = 'u8[16384]{0}', space=vmem, size = 0x4000, scoped, tag = 'input window, operand 4, single buffered']
    #allocation9 [shape = 's32[1]{0}', space=sflag, size = 0x4, scoped, tag = 'scoped memory for tpu_custom_call.1']
    #allocation10 [shape = 'u8[8192]{0}', space=vmem, size = 0x2000, scoped, tag = 'output window, operand 0, single buffered']
    %11 = vsyncpa [#allocation3], 0
    %12 = vsyncpa [#allocation6], 0
    %13 = vsyncpa [#allocation9], 0
    %14 = vsyncpa [#allocation4], 0
    // Predicated region
    $region2: #{tpu_custom_call.1} parent=1 // pred_check
      _
    $region3: #{tpu_custom_call.1} parent=1 // pred_check_branch
      %16 = sbr.rel (0) target = $region5
    $region4: #{tpu_custom_call.1} parent=1 // pred_region
      %s18 = ssub.s32 256, 256
      %19 = vsyncadd [#allocation3], %s18
      %s20 = sshll.u32 [#allocation2], 4
      %s21 = int_to_ptr.vmem [resolvable:$true] %s20
      %26 = dma.hbm_to_vmem [thread:$0]  %s0, 256, %s21, [#allocation3], 128, 128, 8
    $region5: #{tpu_custom_call.1} parent=1 // pred_fallthru
      _
    // Predicated region
    $region6: #{tpu_custom_call.1} parent=1 // pred_check
      _
    $region7: #{tpu_custom_call.1} parent=1 // pred_check_branch
      %28 = sbr.rel (0) target = $region9
    $region8: #{tpu_custom_call.1} parent=1 // pred_region
      %s30 = ssub.s32 256, 256
      %31 = vsyncadd [#allocation6], %s30
      %s32 = sshll.u32 [#allocation5], 4
      %s33 = int_to_ptr.vmem [resolvable:$true] %s32
      %38 = dma.hbm_to_vmem [thread:$0]  %s1, 256, %s33, [#allocation6], 128, 128, 8
    $region9: #{tpu_custom_call.1} parent=1 // pred_fallthru
      _
    // Predicated region
    $region10: #{tpu_custom_call.1} parent=1 // pred_check
      _
    $region11: #{tpu_custom_call.1} parent=1 // pred_check_branch
      %40 = sbr.rel (0) target = $region13
    $region12: #{tpu_custom_call.1} parent=1 // pred_region
      %s42 = ssub.s32 256, 256
      %43 = vsyncadd [#allocation6], %s42
      %s44 = sshll.u32 [#allocation7], 4
      %s45 = int_to_ptr.vmem [resolvable:$true] %s44
      %50 = dma.hbm_to_vmem [thread:$0]  %s2, 256, %s45, [#allocation6], 128, 128, 8
    $region13: #{tpu_custom_call.1} parent=1 // pred_fallthru
      _
    // Predicated region
    $region14: #{tpu_custom_call.1} parent=1 // pred_check
      _
    $region15: #{tpu_custom_call.1} parent=1 // pred_check_branch
      %52 = sbr.rel (0) target = $region17
    $region16: #{tpu_custom_call.1} parent=1 // pred_region
      _
    $region17: #{tpu_custom_call.1} parent=1 // pred_fallthru
      _
    // Predicated region
    $region18: #{tpu_custom_call.1} parent=1 // pred_check
      _
    $region19: #{tpu_custom_call.1} parent=1 // pred_check_branch
      %54 = sbr.rel (0) target = $region21
    $region20: #{tpu_custom_call.1} parent=1 // pred_region
      %s56 = ssub.s32 512, 512
      %57 = vsyncadd [#allocation9], %s56
      %s58 = sshll.u32 [#allocation8], 4
      %s59 = int_to_ptr.vmem [resolvable:$true] %s58
      %64 = dma.hbm_to_vmem [thread:$0]  %s4, 512, %s59, [#allocation9], 128, 128, 8
    $region21: #{tpu_custom_call.1} parent=1 // pred_fallthru
      _
    // Predicated region
    $region22: #{tpu_custom_call.1} parent=1 // pred_check
      _
    $region23: #{tpu_custom_call.1} parent=1 // pred_check_branch
      %66 = sbr.rel (0) target = $region25
    $region24: #{tpu_custom_call.1} parent=1 // pred_region
      _
    $region25: #{tpu_custom_call.1} parent=1 // pred_fallthru
      _
    // Predicated region
    $region26: #{tpu_custom_call.1} parent=1 // pred_check
      _
    $region27: #{tpu_custom_call.1} parent=1 // pred_check_branch
      %68 = sbr.rel (0) target = $region29
    $region28: #{tpu_custom_call.1} parent=1 // pred_region
      %69 = dma.done [#allocation3], 256
    $region29: #{tpu_custom_call.1} parent=1 // pred_fallthru
      _
    // Predicated region
    $region30: #{tpu_custom_call.1} parent=1 // pred_check
      _
    $region31: #{tpu_custom_call.1} parent=1 // pred_check_branch
      %71 = sbr.rel (0) target = $region33
    $region32: #{tpu_custom_call.1} parent=1 // pred_region
      %72 = dma.done [#allocation6], 256
    $region33: #{tpu_custom_call.1} parent=1 // pred_fallthru
      _
    // Predicated region
    $region34: #{tpu_custom_call.1} parent=1 // pred_check
      _
    $region35: #{tpu_custom_call.1} parent=1 // pred_check_branch
      %74 = sbr.rel (0) target = $region37
    $region36: #{tpu_custom_call.1} parent=1 // pred_region
      %75 = dma.done [#allocation6], 256
    $region37: #{tpu_custom_call.1} parent=1 // pred_fallthru
      _
    // Predicated region
    $region38: #{tpu_custom_call.1} parent=1 // pred_check
      _
    $region39: #{tpu_custom_call.1} parent=1 // pred_check_branch
      %77 = sbr.rel (0) target = $region41
    $region40: #{tpu_custom_call.1} parent=1 // pred_region
      %78 = dma.done [#allocation9], 512
    $region41: #{tpu_custom_call.1} parent=1 // pred_fallthru
      _
    %v79 = vld [vmem:[#allocation2] sm:$0xff]
    %v80 = vld [vmem:[#allocation2 + $0x8] sm:$0xff]
    %vm81 = vcmask 261120
    %v82 = vsel %vm81, %v79, 0.0
    %83 = vadd.xlane.f32.xlu0 %v82
    %v84 = vpop.xlane.xlu0 %83
    %v85 = vsel %vm81, %v80, 0.0
    %86 = vadd.xlane.f32.xlu0 %v85
    %v87 = vpop.xlane.xlu0 %86
    %v88 = vrcp.pop 32.0
    %v89 = vmul.f32 %v84, %v88
    %v90 = vmul.f32 %v87, %v88
    %v91 = vsub.f32 %v79, %v89
    %v92 = vsub.f32 %v80, %v90
    %v93 = vmul.f32 %v91, %v91
    %v94 = vmul.f32 %v92, %v92
    %v95 = vsel %vm81, %v93, 0.0
    %96 = vadd.xlane.f32.xlu0 %v95
    %v97 = vpop.xlane.xlu0 %96
    %v98 = vsel %vm81, %v94, 0.0
    %99 = vadd.xlane.f32.xlu0 %v98
    %v100 = vpop.xlane.xlu0 %99
    %v101 = vmul.f32 %v97, %v88
    %v102 = vmul.f32 %v100, %v88
    %v103 = vadd.f32 %v101, 1e-05
    %v104 = vadd.f32 %v102, 1e-05
    %v105 = vrsqrt.pop %v103
    %v106 = vrsqrt.pop %v104
    %v107 = vmul.f32 %v91, %v105
    %v108 = vmul.f32 %v92, %v106
    %v109 = vld [vmem:[#allocation5] sm:$0xff]
    %v110 = vld [vmem:[#allocation5 + $0x8] sm:$0xff]
    %v111 = vld [vmem:[#allocation7] sm:$0xff]
    %v112 = vld [vmem:[#allocation7 + $0x8] sm:$0xff]
    %v113 = vld [vmem:[%s3] sm:$0x1]
    %v115 = vlaneseq
    %v116 = vshrl.u32 %v115, 7
    %v117 = vsub.s32 0, %v116
    %v118 = vrot.slane %v113, %v117
    %vm120 = vcmask 130048
    %v122 = vsel %vm120, %v109, 0
    %v125 = vsel %vm120, %v110, 0
    %127 = vmatprep.subr.mxu0 0.0
    %128 = vmatpush1.msra.mxu0 %v111
    %129 = vmatprep.subr.mxu0 0.0
    %130 = vmatpush1.msra.mxu0 %v112
    %131 = vmatprep.subr.mxu0 0.0
    %132 = vmatpush1.msra.mxu0 0.0
    %133 = vmatprep.subr.mxu0 0.0
    %134 = vmatpush1.msra.mxu0 0.0
    %135 = vmatprep.subr.mxu0 0.0
    %136 = vmatpush1.msra.mxu0 0.0
    %137 = vmatprep.subr.mxu0 0.0
    %138 = vmatpush1.msra.mxu0 0.0
    %139 = vmatprep.subr.mxu0 0.0
    %140 = vmatpush1.msra.mxu0 0.0
    %141 = vmatprep.subr.mxu0 0.0
    %142 = vmatpush1.msra.mxu0 0.0
    %143 = vmatprep.subr.mxu0 0.0
    %144 = vmatpush1.msra.mxu0 0.0
    %145 = vmatprep.subr.mxu0 0.0
    %146 = vmatpush1.msra.mxu0 0.0
    %147 = vmatprep.subr.mxu0 0.0
    %148 = vmatpush1.msra.mxu0 0.0
    %149 = vmatprep.subr.mxu0 0.0
    %150 = vmatpush1.msra.mxu0 0.0
    %151 = vmatprep.subr.mxu0 0.0
    %152 = vmatpush1.msra.mxu0 0.0
    %153 = vmatprep.subr.mxu0 0.0
    %154 = vmatpush1.msra.mxu0 0.0
    %155 = vmatprep.subr.mxu0 0.0
    %156 = vmatpush1.msra.mxu0 0.0
    %157 = vmatprep.subr.mxu0 0.0
    %158 = vmatpush1.msra.mxu0 0.0
    %159 = vmatprep.subr.mxu0 0.0
    %160 = vmatpush1.msra.mxu0 0.0
    %161 = vmatprep.subr.mxu0 0.0
    %162 = vmatpush1.msra.mxu0 0.0
    %163 = vmatprep.subr.mxu0 0.0
    %164 = vmatpush1.msra.mxu0 0.0
    %165 = vmatprep.subr.mxu0 0.0
    %166 = vmatpush1.msra.mxu0 0.0
    %167 = vmatprep.subr.mxu0 0.0
    %168 = vmatpush1.msra.mxu0 0.0
    %169 = vmatprep.subr.mxu0 0.0
    %170 = vmatpush1.msra.mxu0 0.0
    %171 = vmatprep.subr.mxu0 0.0
    %172 = vmatpush1.msra.mxu0 0.0
    %173 = vmatprep.subr.mxu0 0.0
    %174 = vmatpush1.msra.mxu0 0.0
    %175 = vmatprep.subr.mxu0 0.0
    %176 = vmatpush1.msra.mxu0 0.0
    %177 = vmatprep.subr.mxu0 0.0
    %178 = vmatpush1.msra.mxu0 0.0
    %179 = vmatprep.subr.mxu0 0.0
    %180 = vmatpush1.msra.mxu0 0.0
    %181 = vmatprep.subr.mxu0 0.0
    %182 = vmatpush1.msra.mxu0 0.0
    %183 = vmatprep.subr.mxu0 0.0
    %184 = vmatpush1.msra.mxu0 0.0
    %185 = vmatprep.subr.mxu0 0.0
    %186 = vmatpush1.msra.mxu0 0.0
    %187 = vmatprep.subr.mxu0 0.0
    %188 = vmatpush1.msra.mxu0 0.0
    %189 = vmatprep.subr.mxu0 0.0
    %190 = vmatpush1.msra.mxu0 0.0
    %191 = vmatprep.mubr.f32.mxu0 0.0
    %192 = vmatmul.mubr.f32.gmra.mrb[0].mxu0 %v122
    %v193 = vpop.f32.mrb[0].mxu0
    %v194 = vadd.f32 %v118, %v193
    %v195 = vpop.f32.mrb[0].mxu0
    %196 = vmatprep.mubr.f32.mxu0 0.0
    %197 = vmatmul.mubr.f32.gmra.mrb[0].mxu0 %v125
    %v198 = vpop.f32.mrb[0].mxu0
    %v199 = vadd.f32 %v118, %v198
    %v200 = vpop.f32.mrb[0].mxu0
    %201 = vdwg.mxu0
    %v202 = vmax.f32 %v194, 0.0
    %v203 = vmax.f32 %v199, 0.0
    %v204 = vld [vmem:[#allocation8] sm:$0xff]
    %v205 = vld [vmem:[#allocation8 + $0x8] sm:$0xff]
    %v206 = vld [vmem:[#allocation8 + $0x10] sm:$0xff]
    %v207 = vld [vmem:[#allocation8 + $0x18] sm:$0xff]
    %v208 = vld [vmem:[%s5] sm:$0x1]
    %v210 = vlaneseq
    %v211 = vshrl.u32 %v210, 7
    %v212 = vsub.s32 0, %v211
    %v213 = vrot.slane %v208, %v212
    %v216 = vsel %vm81, %v202, 0
    %v219 = vsel %vm81, %v203, 0
    %221 = vmatprep.subr.mxu0 0.0
    %222 = vmatpush1.msra.mxu0 %v204
    %223 = vmatprep.subr.mxu0 0.0
    %224 = vmatpush1.msra.mxu0 %v205
    %225 = vmatprep.subr.mxu0 0.0
    %226 = vmatpush1.msra.mxu0 %v206
    %227 = vmatprep.subr.mxu0 0.0
    %228 = vmatpush1.msra.mxu0 %v207
    %229 = vmatprep.subr.mxu0 0.0
    %230 = vmatpush1.msra.mxu0 0.0
    %231 = vmatprep.subr.mxu0 0.0
    %232 = vmatpush1.msra.mxu0 0.0
    %233 = vmatprep.subr.mxu0 0.0
    %234 = vmatpush1.msra.mxu0 0.0
    %235 = vmatprep.subr.mxu0 0.0
    %236 = vmatpush1.msra.mxu0 0.0
    %237 = vmatprep.subr.mxu0 0.0
    %238 = vmatpush1.msra.mxu0 0.0
    %239 = vmatprep.subr.mxu0 0.0
    %240 = vmatpush1.msra.mxu0 0.0
    %241 = vmatprep.subr.mxu0 0.0
    %242 = vmatpush1.msra.mxu0 0.0
    %243 = vmatprep.subr.mxu0 0.0
    %244 = vmatpush1.msra.mxu0 0.0
    %245 = vmatprep.subr.mxu0 0.0
    %246 = vmatpush1.msra.mxu0 0.0
    %247 = vmatprep.subr.mxu0 0.0
    %248 = vmatpush1.msra.mxu0 0.0
    %249 = vmatprep.subr.mxu0 0.0
    %250 = vmatpush1.msra.mxu0 0.0
    %251 = vmatprep.subr.mxu0 0.0
    %252 = vmatpush1.msra.mxu0 0.0
    %253 = vmatprep.subr.mxu0 0.0
    %254 = vmatpush1.msra.mxu0 0.0
    %255 = vmatprep.subr.mxu0 0.0
    %256 = vmatpush1.msra.mxu0 0.0
    %257 = vmatprep.subr.mxu0 0.0
    %258 = vmatpush1.msra.mxu0 0.0
    %259 = vmatprep.subr.mxu0 0.0
    %260 = vmatpush1.msra.mxu0 0.0
    %261 = vmatprep.subr.mxu0 0.0
    %262 = vmatpush1.msra.mxu0 0.0
    %263 = vmatprep.subr.mxu0 0.0
    %264 = vmatpush1.msra.mxu0 0.0
    %265 = vmatprep.subr.mxu0 0.0
    %266 = vmatpush1.msra.mxu0 0.0
    %267 = vmatprep.subr.mxu0 0.0
    %268 = vmatpush1.msra.mxu0 0.0
    %269 = vmatprep.subr.mxu0 0.0
    %270 = vmatpush1.msra.mxu0 0.0
    %271 = vmatprep.subr.mxu0 0.0
    %272 = vmatpush1.msra.mxu0 0.0
    %273 = vmatprep.subr.mxu0 0.0
    %274 = vmatpush1.msra.mxu0 0.0
    %275 = vmatprep.subr.mxu0 0.0
    %276 = vmatpush1.msra.mxu0 0.0
    %277 = vmatprep.subr.mxu0 0.0
    %278 = vmatpush1.msra.mxu0 0.0
    %279 = vmatprep.subr.mxu0 0.0
    %280 = vmatpush1.msra.mxu0 0.0
    %281 = vmatprep.subr.mxu0 0.0
    %282 = vmatpush1.msra.mxu0 0.0
    %283 = vmatprep.subr.mxu0 0.0
    %284 = vmatpush1.msra.mxu0 0.0
    %285 = vmatprep.mubr.f32.mxu0 0.0
    %286 = vmatmul.mubr.f32.gmra.mrb[0].mxu0 %v216
    %v287 = vpop.f32.mrb[0].mxu0
    %v288 = vadd.f32 %v213, %v287
    %v289 = vpop.f32.mrb[0].mxu0
    %290 = vmatprep.mubr.f32.mxu0 0.0
    %291 = vmatmul.mubr.f32.gmra.mrb[0].mxu0 %v219
    %v292 = vpop.f32.mrb[0].mxu0
    %v293 = vadd.f32 %v213, %v292
    %v294 = vpop.f32.mrb[0].mxu0
    %295 = vdwg.mxu0
    %v296 = vmul.f32 %v288, %v107
    %v297 = vmul.f32 %v293, %v108
    %300 = vrot.lane.b32.xlu0 %v288, 96
    %v301 = vpop.permute.xlu0 %300
    %302 = vrot.lane.b32.xlu0 %v293, 96
    %v303 = vpop.permute.xlu0 %302
    %v306 = vadd.f32 %v296, %v301
    %v307 = vadd.f32 %v297, %v303
    %308 = vst.msk [vmem:[#allocation10] sm:$0xff] %vm81, %v306
    %309 = vst.msk [vmem:[#allocation10 + $0x8] sm:$0xff] %vm81, %v307
    // Predicated region
    $region42: #{tpu_custom_call.1} parent=1 // pred_check
      _
    $region43: #{tpu_custom_call.1} parent=1 // pred_check_branch
      %311 = sbr.rel (0) target = $region45
    $region44: #{tpu_custom_call.1} parent=1 // pred_region
      %s313 = ssub.s32 256, 256
      %314 = vsyncadd [#allocation4], %s313
      %s315 = sshll.u32 [#allocation10], 4
      %s316 = int_to_ptr.vmem [resolvable:$true] %s315
      %321 = dma.vmem_to_hbm [thread:$0]  %s316, 256, %s6, [#allocation4], 128, 128, 8
    $region45: #{tpu_custom_call.1} parent=1 // pred_fallthru
      _
    // Predicated region
    $region46: #{tpu_custom_call.1} parent=1 // pred_check
      _
    $region47: #{tpu_custom_call.1} parent=1 // pred_check_branch
      %323 = sbr.rel (0) target = $region49
    $region48: #{tpu_custom_call.1} parent=1 // pred_region
      %324 = dma.done [#allocation4], 256
    $region49: #{tpu_custom_call.1} parent=1 // pred_fallthru
      _
    %325 = vsyncpa [#allocation3], 1
    %326 = vsyncpa [#allocation6], 1
    %327 = vsyncpa [#allocation9], 1
    %328 = vsyncpa [#allocation4], 1

</llo_original>
